<compile_context>
chip_gen: v7x
topology: tpu7x:2x2x1
jax: 0.10.0
libtpu: 0.0.40
codegen_flags: <defaults>
</compile_context>

<pallas_src>
import jax
import jax.numpy as jnp
from jax.experimental import pallas as pl
from jax.experimental.pallas import tpu as pltpu


def _chunking_params(chunk_size: int, input_timesteps: int):
    half = chunk_size // 2
    padding = half - input_timesteps % half
    if padding == half:
        padding = 0
    rows = (input_timesteps + padding) // half - 1
    cols = chunk_size
    return half, padding, rows, cols


def _pick_block_n(N, itemsize, T, rows, cols):
    """Sublane-aligned block along the flattened B*C axis.

    Sized so double-buffered input+output blocks stay well inside the scoped
    VMEM default on v5e/v6e/v7x, and (when N allows) capped so the "parallel"
    grid axis has >= 2 steps for megacore / dual-TensorCore sharding.
    """
    sub = max(8, 32 // max(itemsize, 1))            # 8 f32 / 16 bf16 / 32 int8 sublanes
    per_row = 2 * itemsize * (T + rows * cols)      # input + output, x2 double-buffer
    budget = 8 * 1024 * 1024                        # well under the 16 MiB scoped floor
    bn = max(sub, (budget // per_row) // sub * sub)
    if N >= 2 * sub:
        # keep at least 2 grid steps so the parallel axis can feed both cores
        half_n = ((N + 1) // 2 + sub - 1) // sub * sub
        bn = min(bn, half_n)
    if bn >= N:
        return N                                    # single full block
    return bn


def _make_kernel(T, half, padding, rows, cols, bn, dtype):
    def kernel(x_ref, o_ref):
        # x_ref: (bn, T) block of the flattened (B*C, T) input.
        x = x_ref[...]
        # All windows except the last lie entirely inside the unpadded input
        # (r*half + cols <= rows*half < T for r < rows-1).
        wins = [x[:, r * half: r * half + cols] for r in range(rows - 1)]
        # Last window: fuse the right-side zero pad here (replaces wrapper pad).
        tail = x[:, (rows - 1) * half: T]           # (bn, cols - padding)
        if padding > 0:
            tail = jnp.concatenate(
                [tail, jnp.zeros((bn, padding), dtype)], axis=-1)
        wins.append(tail)
        # (bn, cols, rows): one full-block store, rows in the lane dim
        # (layout dictated by the module's output shape).
        o_ref[...] = jnp.stack(wins, axis=-1)
    return kernel


def chunking_forward(x, chunk_size: int, input_timesteps: int):
    assert x.shape[-1] == input_timesteps
    B, C, T = x.shape
    half, padding, rows, cols = _chunking_params(chunk_size, input_timesteps)
    assert rows >= 1, "degenerate input_timesteps (< half_chunk) not supported"

    N = B * C
    x2 = x.reshape(N, T)                            # free: contiguous, no copy
    itemsize = jnp.dtype(x.dtype).itemsize
    bn = _pick_block_n(N, itemsize, T, rows, cols)
    grid = (pl.cdiv(N, bn),)

    kernel = _make_kernel(T, half, padding, rows, cols, bn, x.dtype)

    out2 = pl.pallas_call(
        kernel,
        out_shape=jax.ShapeDtypeStruct((N, cols, rows), x.dtype),
        grid_spec=pltpu.PrefetchScalarGridSpec(
            num_scalar_prefetch=0,
            grid=grid,
            in_specs=[pl.BlockSpec((bn, T), lambda i: (i, 0))],
            out_specs=pl.BlockSpec((bn, cols, rows), lambda i: (i, 0, 0)),
        ),
        compiler_params=pltpu.CompilerParams(
            dimension_semantics=("parallel",)),
    )(x2)
    return out2.reshape(B, C, cols, rows)


def chunking_reference(x, chunk_size: int, input_timesteps: int):
    """Pure-JAX reference mirroring the PyTorch module exactly."""
    half, padding, rows, cols = _chunking_params(chunk_size, input_timesteps)
    x_pad = jnp.pad(x, ((0, 0), (0, 0), (0, padding)))
    index = (jnp.arange(cols)[None, :] + half * jnp.arange(rows)[:, None]).T
    return x_pad[:, :, index]


if __name__ == "__main__":
    chunk_size = 8
    input_timesteps = 14      # -> half=4, padding=2, rows=3, cols=8
    B, C = 2, 16              # N=32 -> block_n=16, 2 parallel grid steps

    key = jax.random.PRNGKey(0)
    x = jax.random.normal(key, (B, C, input_timesteps), dtype=jnp.float32)

    out = chunking_forward(x, chunk_size, input_timesteps)
    out = jax.block_until_ready(out)

    ref = chunking_reference(x, chunk_size, input_timesteps)
    assert out.shape == ref.shape, (out.shape, ref.shape)
    assert jnp.allclose(out, ref), "Pallas output mismatch vs reference"

    print("KERNEL_OK")
</pallas_src>

<mosaic_0001>
module attributes {stable_mosaic.version = 11 : i64} {
  func.func @kernel(%arg0: i32, %arg1: memref<16x14xf32, #tpu.memory_space<vmem>>, %arg2: memref<16x8x3xf32, #tpu.memory_space<vmem>>) attributes {dimension_semantics = [#tpu.dimension_semantics<parallel>], iteration_bounds = array<i64: 2>, scalar_prefetch = 0 : i64, scratch_operands = 0 : i64, tpu.core_type = #tpu.core_type<tc>, window_params = [{transform_indices = @transform_0, window_bounds = array<i64: 16, 14>}, {transform_indices = @transform_1, window_bounds = array<i64: 16, 8, 3>}]} {
    %c0 = arith.constant 0 : index
    %c0_0 = arith.constant 0 : index
    %0 = vector.load %arg1[%c0, %c0_0] : memref<16x14xf32, #tpu.memory_space<vmem>>, vector<16x14xf32>
    %1 = vector.extract_strided_slice %0 {offsets = [0, 0], sizes = [16, 8], strides = [1, 1]} : vector<16x14xf32> to vector<16x8xf32>
    %2 = vector.extract_strided_slice %0 {offsets = [0, 4], sizes = [16, 8], strides = [1, 1]} : vector<16x14xf32> to vector<16x8xf32>
    %3 = vector.extract_strided_slice %0 {offsets = [0, 8], sizes = [16, 6], strides = [1, 1]} : vector<16x14xf32> to vector<16x6xf32>
    %cst = arith.constant 0.000000e+00 : f32
    %4 = vector.broadcast %cst : f32 to vector<16x2xf32>
    %5 = tpu.concatenate %3, %4 in 1 : vector<16x6xf32>, vector<16x2xf32> -> vector<16x8xf32>
    %6 = vector.shape_cast %1 : vector<16x8xf32> to vector<16x8x1xf32>
    %7 = vector.shape_cast %2 : vector<16x8xf32> to vector<16x8x1xf32>
    %8 = vector.shape_cast %5 : vector<16x8xf32> to vector<16x8x1xf32>
    %9 = tpu.concatenate %6, %7, %8 in 2 : vector<16x8x1xf32>, vector<16x8x1xf32>, vector<16x8x1xf32> -> vector<16x8x3xf32>
    %c0_1 = arith.constant 0 : index
    %c0_2 = arith.constant 0 : index
    %c0_3 = arith.constant 0 : index
    %10 = vector.load %arg2[%c0_1, %c0_2, %c0_3] : memref<16x8x3xf32, #tpu.memory_space<vmem>>, vector<16x8x3xf32>
    tpu.vector_store %arg2[%c0_1, %c0_2, %c0_3], %9 {strides = array<i32>} : memref<16x8x3xf32, #tpu.memory_space<vmem>>, vector<16x8x3xf32>,
    return
  }
  func.func @transform_0(%arg0: i32) -> (i32, i32) {
    %c0_i32 = arith.constant 0 : i32
    %c0_i32_0 = arith.constant 0 : i32
    return %arg0, %c0_i32 : i32, i32
  }
  func.func @transform_1(%arg0: i32) -> (i32, i32, i32) {
    %c0_i32 = arith.constant 0 : i32
    %c0_i32_0 = arith.constant 0 : i32
    %c0_i32_1 = arith.constant 0 : i32
    return %arg0, %c0_i32, %c0_i32_0 : i32, i32, i32
  }
}

</mosaic_0001>

<llo_original>
// kernel: tpu_custom_call.1
$region0: #{tpu_custom_call.1}
  #allocation0 [shape = 'u32[]', space=smem, size = 0x4, offset = 0x4, fixed_abs, tag = 'smem constant byte address 0x4 - core index']
  #allocation1 [shape = 'u32[144,128]{1,0:T(1,128)}', space=vmem, size = 0x12000, scoped, tag = 'internal scratch']
  %s0 = inlined_call_operand.vmem [shape: f32[32,14], index: 0, kind: input, shape index: {}]
  %s1 = inlined_call_operand.vmem [shape: f32[32,8,3], index: 1, kind: output, shape index: {}]
  %s2 = sld [smem:[#allocation0]]
  $region37: #{tpu_custom_call.1} parent=0
    _
  %s4 = ssub.s32 1, %s2
  %s5 = scalar_select 0, %s4, %s2
  loop: start=0, step=1, limit=4
  $region2: #{tpu_custom_call.1} parent=0 // loop_pre_header
    _
  $region3: #{tpu_custom_call.1} parent=0 // loop_header
    %s7 = sphi 0, %s11
    %p8 = scmp.ge.s32.totalorder %s7, 4
    %s17 = sphi 0, %s19
    %s20 = sphi 0, %s17
    %s21 = sphi 0, %s20
    %s37 = sphi 0, %s21
    %s43 = sphi 0, %s45
    %s46 = sphi 0, %s43
    %s47 = sphi 0, %s46
    %s63 = sphi 0, %s47
  $region4: #{tpu_custom_call.1} parent=0 // loop_header_branch
    %10 = sbr.rel (%p8) target = $region8
  $region5: #{tpu_custom_call.1} parent=0 // loop_body
    %s12 = ssub.s32 %s7, 1
    %s13 = ssub.s32 %s7, 2
    %s14 = sadd.s32 %s7, 1
    %s15 = ssub.s32 %s7, %s14
    %p16 = scmp.eq.s32.totalorder %s15, 0
    %s18 = sadd.s32 %s17, 1
    %s19 = scalar_select %p16, %s17, %s18
    %p22 = pneg %p16
    %p23 = scmp.eq.s32.totalorder %s7, 1
    %p24 = por %p22, %p23
    %p25 = scmp.ne.s32.totalorder %s17, %s20
    %p26 = scmp.eq.s32.totalorder %s7, 0
    %p27 = por %p25, %p26
    %p28 = scmp.ne.s32.totalorder %s17, %s20
    %p29 = scmp.eq.s32.totalorder %s12, 1
    %p30 = por %p28, %p29
    %p31 = scmp.ne.s32.totalorder %s20, %s21
    %p32 = scmp.eq.s32.totalorder %s12, 0
    %p33 = por %p31, %p32
    %p34 = scmp.ne.s32.totalorder %s20, %s21
    %p35 = scmp.eq.s32.totalorder %s13, 1
    %p36 = por %p34, %p35
    %p38 = scmp.ne.s32.totalorder %s21, %s37
    %p39 = scmp.eq.s32.totalorder %s13, 0
    %p40 = por %p38, %p39
    %s41 = ssub.s32 %s7, %s14
    %p42 = scmp.eq.s32.totalorder %s41, 0
    %s44 = sadd.s32 %s43, 1
    %s45 = scalar_select %p42, %s43, %s44
    %p48 = pneg %p42
    %p49 = scmp.eq.s32.totalorder %s7, 1
    %p50 = por %p48, %p49
    %p51 = scmp.ne.s32.totalorder %s43, %s46
    %p52 = scmp.eq.s32.totalorder %s7, 0
    %p53 = por %p51, %p52
    %p54 = scmp.ne.s32.totalorder %s43, %s46
    %p55 = scmp.eq.s32.totalorder %s12, 1
    %p56 = por %p54, %p55
    %p57 = scmp.ne.s32.totalorder %s46, %s47
    %p58 = scmp.eq.s32.totalorder %s12, 0
    %p59 = por %p57, %p58
    %p60 = scmp.ne.s32.totalorder %s46, %s47
    %p61 = scmp.eq.s32.totalorder %s13, 1
    %p62 = por %p60, %p61
    %p64 = scmp.ne.s32.totalorder %s47, %s63
    %p65 = scmp.eq.s32.totalorder %s13, 0
    %p66 = por %p64, %p65
    %p67 = scmp.le.s32.totalorder 1, %s7
    %p68 = scmp.lt.s32.totalorder %s7, 3
    %p69 = pnand %p67, %p68
    %p70 = pneg %p69
    // Predicated region
    $region9: #{tpu_custom_call.1} parent=5 // pred_check
      _
    $region10: #{tpu_custom_call.1} parent=5 // pred_check_branch
      %72 = sbr.rel (%p69) target = $region12
    $region11: #{tpu_custom_call.1} parent=5 // pred_region
      %s73 = ssub.s32 %s7, 1
    $region12: #{tpu_custom_call.1} parent=5 // pred_fallthru
      _
    %p74 = scmp.lt.s32.totalorder %s7, 2
    // Predicated region
    $region13: #{tpu_custom_call.1} parent=5 // pred_check
      %p75 = pneg %p74
    $region14: #{tpu_custom_call.1} parent=5 // pred_check_branch
      %77 = sbr.rel (%p75) target = $region16
    $region15: #{tpu_custom_call.1} parent=5 // pred_region
      // Predicated region
      $region17: #{tpu_custom_call.1} parent=15 // pred_check
        %p78 = pneg %p27
      $region18: #{tpu_custom_call.1} parent=15 // pred_check_branch
        %80 = sbr.rel (%p78) target = $region20
      $region19: #{tpu_custom_call.1} parent=15 // pred_region
        %s81 = smul.u32 2, %s7
        %p82 = scmp.lt.s32.totalorder %s81, 3
        %s83 = scalar_select %p82, %s81, 3
        %s84 = smul.addr %s83, 8
        %s85 = scalar_lea.vmem %s0, %s84
        %s86 = smul.u32 2, %s7
      $region20: #{tpu_custom_call.1} parent=15 // pred_fallthru
        _
    $region16: #{tpu_custom_call.1} parent=5 // pred_fallthru
      _
    %p87 = scmp.le.s32.totalorder 1, %s7
    %p88 = scmp.lt.s32.totalorder %s7, 3
    %p89 = pnand %p87, %p88
    %p90 = pneg %p89
    // Predicated region
    $region21: #{tpu_custom_call.1} parent=5 // pred_check
      _
    $region22: #{tpu_custom_call.1} parent=5 // pred_check_branch
      %92 = sbr.rel (%p89) target = $region24
    $region23: #{tpu_custom_call.1} parent=5 // pred_region
      %s93 = ssub.s32 %s7, 1
      %s94 = smul.u32 2, %s12
      %p95 = scmp.lt.s32.totalorder %s94, 3
      %s96 = scalar_select %p95, %s94, 3
      %s97 = smul.addr %s96, 8
      %s98 = scalar_lea.vmem %s0, %s97
      %p99 = pneg %p33
      %p100 = pneg %p30
      %p101 = pneg %p59
      %p102 = pneg %p56
      %s103 = smul.u32 16, %s12
      %p104 = scmp.lt.s32.totalorder %s103, 31
      %s105 = scalar_select %p104, %s103, 31
      %s106 = smul.addr %s105, 8
      %s107 = scalar_lea.vmem %s1, %s106
      %s108 = smul.u32 2, %s12
      %p109 = scmp.lt.s32.totalorder %s108, 3
      %s110 = scalar_select %p109, %s108, 3
      %s111 = smul.addr %s110, 8
      %s112 = scalar_lea.vmem %s0, %s111
      %s113 = smul.u32 2, %s12
      %s114 = smul.u32 16, %s12
      %p115 = scmp.lt.s32.totalorder %s114, 31
      %s116 = scalar_select %p115, %s114, 31
      %s117 = smul.addr %s116, 8
      %s118 = scalar_lea.vmem %s1, %s117
      %s119 = smul.u32 16, %s12
      %v120 = vld [vmem:[%s112] sm:$0xff]
      %v121 = vld [vmem:[%s112 + $0x8] sm:$0xff]
      %124 = vrot.lane.b32.xlu0 %v120, 120
      %v125 = vpop.permute.xlu0 %124
      %126 = vrot.lane.b32.xlu0 %v121, 120
      %v127 = vpop.permute.xlu0 %126
      %vm130 = vcmask 48128
      %v131 = vsel %vm130, %v125, 0.0
      %v132 = vsel %vm130, %v127, 0.0
      %v133 = vlaneseq
      %v134 = vshrl.u32 %v133, 7
      %v135 = vsub.s32 0, %v134
      %v136 = vrot.slane %v120, %v135
      %138 = vbcast.lane.b32.xlu0 %v136, 256
      %v139 = vpop.permute.xlu0 %138
      %v140 = vlaneseq
      %v141 = vshrl.u32 %v140, 7
      %v142 = vsub.s32 1, %v141
      %v143 = vrot.slane %v120, %v142
      %145 = vbcast.lane.b32.xlu0 %v143, 256
      %v146 = vpop.permute.xlu0 %145
      %v147 = vlaneseq
      %v148 = vshrl.u32 %v147, 7
      %v149 = vsub.s32 2, %v148
      %v150 = vrot.slane %v120, %v149
      %152 = vbcast.lane.b32.xlu0 %v150, 256
      %v153 = vpop.permute.xlu0 %152
      %v154 = vlaneseq
      %v155 = vshrl.u32 %v154, 7
      %v156 = vsub.s32 3, %v155
      %v157 = vrot.slane %v120, %v156
      %159 = vbcast.lane.b32.xlu0 %v157, 256
      %v160 = vpop.permute.xlu0 %159
      %v161 = vlaneseq
      %v162 = vshrl.u32 %v161, 7
      %v163 = vsub.s32 4, %v162
      %v164 = vrot.slane %v120, %v163
      %166 = vbcast.lane.b32.xlu0 %v164, 256
      %v167 = vpop.permute.xlu0 %166
      %v168 = vlaneseq
      %v169 = vshrl.u32 %v168, 7
      %v170 = vsub.s32 5, %v169
      %v171 = vrot.slane %v120, %v170
      %173 = vbcast.lane.b32.xlu0 %v171, 256
      %v174 = vpop.permute.xlu0 %173
      %v175 = vlaneseq
      %v176 = vshrl.u32 %v175, 7
      %v177 = vsub.s32 6, %v176
      %v178 = vrot.slane %v120, %v177
      %180 = vbcast.lane.b32.xlu0 %v178, 256
      %v181 = vpop.permute.xlu0 %180
      %v182 = vlaneseq
      %v183 = vshrl.u32 %v182, 7
      %v184 = vsub.s32 7, %v183
      %v185 = vrot.slane %v120, %v184
      %187 = vbcast.lane.b32.xlu0 %v185, 256
      %v188 = vpop.permute.xlu0 %187
      %v189 = vlaneseq
      %v190 = vshrl.u32 %v189, 7
      %v191 = vsub.s32 0, %v190
      %v192 = vrot.slane %v121, %v191
      %194 = vbcast.lane.b32.xlu0 %v192, 256
      %v195 = vpop.permute.xlu0 %194
      %v196 = vlaneseq
      %v197 = vshrl.u32 %v196, 7
      %v198 = vsub.s32 1, %v197
      %v199 = vrot.slane %v121, %v198
      %201 = vbcast.lane.b32.xlu0 %v199, 256
      %v202 = vpop.permute.xlu0 %201
      %v203 = vlaneseq
      %v204 = vshrl.u32 %v203, 7
      %v205 = vsub.s32 2, %v204
      %v206 = vrot.slane %v121, %v205
      %208 = vbcast.lane.b32.xlu0 %v206, 256
      %v209 = vpop.permute.xlu0 %208
      %v210 = vlaneseq
      %v211 = vshrl.u32 %v210, 7
      %v212 = vsub.s32 3, %v211
      %v213 = vrot.slane %v121, %v212
      %215 = vbcast.lane.b32.xlu0 %v213, 256
      %v216 = vpop.permute.xlu0 %215
      %v217 = vlaneseq
      %v218 = vshrl.u32 %v217, 7
      %v219 = vsub.s32 4, %v218
      %v220 = vrot.slane %v121, %v219
      %222 = vbcast.lane.b32.xlu0 %v220, 256
      %v223 = vpop.permute.xlu0 %222
      %v224 = vlaneseq
      %v225 = vshrl.u32 %v224, 7
      %v226 = vsub.s32 5, %v225
      %v227 = vrot.slane %v121, %v226
      %229 = vbcast.lane.b32.xlu0 %v227, 256
      %v230 = vpop.permute.xlu0 %229
      %v231 = vlaneseq
      %v232 = vshrl.u32 %v231, 7
      %v233 = vsub.s32 6, %v232
      %v234 = vrot.slane %v121, %v233
      %236 = vbcast.lane.b32.xlu0 %v234, 256
      %v237 = vpop.permute.xlu0 %236
      %v238 = vlaneseq
      %v239 = vshrl.u32 %v238, 7
      %v240 = vsub.s32 7, %v239
      %v241 = vrot.slane %v121, %v240
      %243 = vbcast.lane.b32.xlu0 %v241, 256
      %v244 = vpop.permute.xlu0 %243
      %s246 = sor.u32 256, 4
      %247 = vbcast.lane.b32.xlu0 %v136, %s246
      %v248 = vpop.permute.xlu0 %247
      %s250 = sor.u32 256, 4
      %251 = vbcast.lane.b32.xlu0 %v143, %s250
      %v252 = vpop.permute.xlu0 %251
      %s254 = sor.u32 256, 4
      %255 = vbcast.lane.b32.xlu0 %v150, %s254
      %v256 = vpop.permute.xlu0 %255
      %s258 = sor.u32 256, 4
      %259 = vbcast.lane.b32.xlu0 %v157, %s258
      %v260 = vpop.permute.xlu0 %259
      %s262 = sor.u32 256, 4
      %263 = vbcast.lane.b32.xlu0 %v164, %s262
      %v264 = vpop.permute.xlu0 %263
      %s266 = sor.u32 256, 4
      %267 = vbcast.lane.b32.xlu0 %v171, %s266
      %v268 = vpop.permute.xlu0 %267
      %s270 = sor.u32 256, 4
      %271 = vbcast.lane.b32.xlu0 %v178, %s270
      %v272 = vpop.permute.xlu0 %271
      %s274 = sor.u32 256, 4
      %275 = vbcast.lane.b32.xlu0 %v185, %s274
      %v276 = vpop.permute.xlu0 %275
      %s278 = sor.u32 256, 4
      %279 = vbcast.lane.b32.xlu0 %v192, %s278
      %v280 = vpop.permute.xlu0 %279
      %s282 = sor.u32 256, 4
      %283 = vbcast.lane.b32.xlu0 %v199, %s282
      %v284 = vpop.permute.xlu0 %283
      %s286 = sor.u32 256, 4
      %287 = vbcast.lane.b32.xlu0 %v206, %s286
      %v288 = vpop.permute.xlu0 %287
      %s290 = sor.u32 256, 4
      %291 = vbcast.lane.b32.xlu0 %v213, %s290
      %v292 = vpop.permute.xlu0 %291
      %s294 = sor.u32 256, 4
      %295 = vbcast.lane.b32.xlu0 %v220, %s294
      %v296 = vpop.permute.xlu0 %295
      %s298 = sor.u32 256, 4
      %299 = vbcast.lane.b32.xlu0 %v227, %s298
      %v300 = vpop.permute.xlu0 %299
      %s302 = sor.u32 256, 4
      %303 = vbcast.lane.b32.xlu0 %v234, %s302
      %v304 = vpop.permute.xlu0 %303
      %s306 = sor.u32 256, 4
      %307 = vbcast.lane.b32.xlu0 %v241, %s306
      %v308 = vpop.permute.xlu0 %307
      %v309 = vlaneseq
      %v310 = vshrl.u32 %v309, 7
      %v311 = vsub.s32 0, %v310
      %v312 = vrot.slane %v131, %v311
      %314 = vbcast.lane.b32.xlu0 %v312, 256
      %v315 = vpop.permute.xlu0 %314
      %v316 = vlaneseq
      %v317 = vshrl.u32 %v316, 7
      %v318 = vsub.s32 1, %v317
      %v319 = vrot.slane %v131, %v318
      %321 = vbcast.lane.b32.xlu0 %v319, 256
      %v322 = vpop.permute.xlu0 %321
      %v323 = vlaneseq
      %v324 = vshrl.u32 %v323, 7
      %v325 = vsub.s32 2, %v324
      %v326 = vrot.slane %v131, %v325
      %328 = vbcast.lane.b32.xlu0 %v326, 256
      %v329 = vpop.permute.xlu0 %328
      %v330 = vlaneseq
      %v331 = vshrl.u32 %v330, 7
      %v332 = vsub.s32 3, %v331
      %v333 = vrot.slane %v131, %v332
      %335 = vbcast.lane.b32.xlu0 %v333, 256
      %v336 = vpop.permute.xlu0 %335
      %v337 = vlaneseq
      %v338 = vshrl.u32 %v337, 7
      %v339 = vsub.s32 4, %v338
      %v340 = vrot.slane %v131, %v339
      %342 = vbcast.lane.b32.xlu0 %v340, 256
      %v343 = vpop.permute.xlu0 %342
      %v344 = vlaneseq
      %v345 = vshrl.u32 %v344, 7
      %v346 = vsub.s32 5, %v345
      %v347 = vrot.slane %v131, %v346
      %349 = vbcast.lane.b32.xlu0 %v347, 256
      %v350 = vpop.permute.xlu0 %349
      %v351 = vlaneseq
      %v352 = vshrl.u32 %v351, 7
      %v353 = vsub.s32 6, %v352
      %v354 = vrot.slane %v131, %v353
      %356 = vbcast.lane.b32.xlu0 %v354, 256
      %v357 = vpop.permute.xlu0 %356
      %v358 = vlaneseq
      %v359 = vshrl.u32 %v358, 7
      %v360 = vsub.s32 7, %v359
      %v361 = vrot.slane %v131, %v360
      %363 = vbcast.lane.b32.xlu0 %v361, 256
      %v364 = vpop.permute.xlu0 %363
      %v365 = vlaneseq
      %v366 = vshrl.u32 %v365, 7
      %v367 = vsub.s32 0, %v366
      %v368 = vrot.slane %v132, %v367
      %370 = vbcast.lane.b32.xlu0 %v368, 256
      %v371 = vpop.permute.xlu0 %370
      %v372 = vlaneseq
      %v373 = vshrl.u32 %v372, 7
      %v374 = vsub.s32 1, %v373
      %v375 = vrot.slane %v132, %v374
      %377 = vbcast.lane.b32.xlu0 %v375, 256
      %v378 = vpop.permute.xlu0 %377
      %v379 = vlaneseq
      %v380 = vshrl.u32 %v379, 7
      %v381 = vsub.s32 2, %v380
      %v382 = vrot.slane %v132, %v381
      %384 = vbcast.lane.b32.xlu0 %v382, 256
      %v385 = vpop.permute.xlu0 %384
      %v386 = vlaneseq
      %v387 = vshrl.u32 %v386, 7
      %v388 = vsub.s32 3, %v387
      %v389 = vrot.slane %v132, %v388
      %391 = vbcast.lane.b32.xlu0 %v389, 256
      %v392 = vpop.permute.xlu0 %391
      %v393 = vlaneseq
      %v394 = vshrl.u32 %v393, 7
      %v395 = vsub.s32 4, %v394
      %v396 = vrot.slane %v132, %v395
      %398 = vbcast.lane.b32.xlu0 %v396, 256
      %v399 = vpop.permute.xlu0 %398
      %v400 = vlaneseq
      %v401 = vshrl.u32 %v400, 7
      %v402 = vsub.s32 5, %v401
      %v403 = vrot.slane %v132, %v402
      %405 = vbcast.lane.b32.xlu0 %v403, 256
      %v406 = vpop.permute.xlu0 %405
      %v407 = vlaneseq
      %v408 = vshrl.u32 %v407, 7
      %v409 = vsub.s32 6, %v408
      %v410 = vrot.slane %v132, %v409
      %412 = vbcast.lane.b32.xlu0 %v410, 256
      %v413 = vpop.permute.xlu0 %412
      %v414 = vlaneseq
      %v415 = vshrl.u32 %v414, 7
      %v416 = vsub.s32 7, %v415
      %v417 = vrot.slane %v132, %v416
      %419 = vbcast.lane.b32.xlu0 %v417, 256
      %v420 = vpop.permute.xlu0 %419
      %vm421 = vcmask 7168
      %v422 = vsel %vm421, %v139, %v248
      %v423 = vsel %vm421, %v146, %v252
      %v424 = vsel %vm421, %v153, %v256
      %v425 = vsel %vm421, %v160, %v260
      %v426 = vsel %vm421, %v167, %v264
      %v427 = vsel %vm421, %v174, %v268
      %v428 = vsel %vm421, %v181, %v272
      %v429 = vsel %vm421, %v188, %v276
      %v430 = vsel %vm421, %v195, %v280
      %v431 = vsel %vm421, %v202, %v284
      %v432 = vsel %vm421, %v209, %v288
      %v433 = vsel %vm421, %v216, %v292
      %v434 = vsel %vm421, %v223, %v296
      %v435 = vsel %vm421, %v230, %v300
      %v436 = vsel %vm421, %v237, %v304
      %v437 = vsel %vm421, %v244, %v308
      %vm438 = vcmask 15360
      %v439 = vsel %vm438, %v422, %v315
      %v440 = vsel %vm438, %v423, %v322
      %v441 = vsel %vm438, %v424, %v329
      %v442 = vsel %vm438, %v425, %v336
      %v443 = vsel %vm438, %v426, %v343
      %v444 = vsel %vm438, %v427, %v350
      %v445 = vsel %vm438, %v428, %v357
      %v446 = vsel %vm438, %v429, %v364
      %v447 = vsel %vm438, %v430, %v371
      %v448 = vsel %vm438, %v431, %v378
      %v449 = vsel %vm438, %v432, %v385
      %v450 = vsel %vm438, %v433, %v392
      %v451 = vsel %vm438, %v434, %v399
      %v452 = vsel %vm438, %v435, %v406
      %v453 = vsel %vm438, %v436, %v413
      %v454 = vsel %vm438, %v437, %v420
      %vm455 = vcmask 23552
      %456 = vst.msk [vmem:[%s118] sm:$0xff] %vm455, %v439
      %457 = vst.msk [vmem:[%s118 + $0x8] sm:$0xff] %vm455, %v440
      %458 = vst.msk [vmem:[%s118 + $0x10] sm:$0xff] %vm455, %v441
      %459 = vst.msk [vmem:[%s118 + $0x18] sm:$0xff] %vm455, %v442
      %460 = vst.msk [vmem:[%s118 + $0x20] sm:$0xff] %vm455, %v443
      %461 = vst.msk [vmem:[%s118 + $0x28] sm:$0xff] %vm455, %v444
      %462 = vst.msk [vmem:[%s118 + $0x30] sm:$0xff] %vm455, %v445
      %463 = vst.msk [vmem:[%s118 + $0x38] sm:$0xff] %vm455, %v446
      %464 = vst.msk [vmem:[%s118 + $0x40] sm:$0xff] %vm455, %v447
      %465 = vst.msk [vmem:[%s118 + $0x48] sm:$0xff] %vm455, %v448
      %466 = vst.msk [vmem:[%s118 + $0x50] sm:$0xff] %vm455, %v449
      %467 = vst.msk [vmem:[%s118 + $0x58] sm:$0xff] %vm455, %v450
      %468 = vst.msk [vmem:[%s118 + $0x60] sm:$0xff] %vm455, %v451
      %469 = vst.msk [vmem:[%s118 + $0x68] sm:$0xff] %vm455, %v452
      %470 = vst.msk [vmem:[%s118 + $0x70] sm:$0xff] %vm455, %v453
      %471 = vst.msk [vmem:[%s118 + $0x78] sm:$0xff] %vm455, %v454
      %s472 = smul.u32 16, %s12
      %p473 = scmp.lt.s32.totalorder %s472, 31
      %s474 = scalar_select %p473, %s472, 31
      %s475 = smul.addr %s474, 8
      %s476 = scalar_lea.vmem %s1, %s475
      // Predicated region
      $region25: #{tpu_custom_call.1} parent=23 // pred_check
        %p477 = pneg %p56
      $region26: #{tpu_custom_call.1} parent=23 // pred_check_branch
        %479 = sbr.rel (%p477) target = $region28
      $region27: #{tpu_custom_call.1} parent=23 // pred_region
        %s480 = smul.u32 16, %s12
      $region28: #{tpu_custom_call.1} parent=23 // pred_fallthru
        _
    $region24: #{tpu_custom_call.1} parent=5 // pred_fallthru
      _
    %p481 = scmp.le.s32.totalorder 2, %s7
    // Predicated region
    $region29: #{tpu_custom_call.1} parent=5 // pred_check
      %p482 = pneg %p481
    $region30: #{tpu_custom_call.1} parent=5 // pred_check_branch
      %484 = sbr.rel (%p482) target = $region32
    $region31: #{tpu_custom_call.1} parent=5 // pred_region
      %s485 = ssub.s32 %s7, 2
      // Predicated region
      $region33: #{tpu_custom_call.1} parent=31 // pred_check
        %p486 = pneg %p62
      $region34: #{tpu_custom_call.1} parent=31 // pred_check_branch
        %488 = sbr.rel (%p486) target = $region36
      $region35: #{tpu_custom_call.1} parent=31 // pred_region
        %s489 = smul.u32 16, %s13
        %p490 = scmp.lt.s32.totalorder %s489, 31
        %s491 = scalar_select %p490, %s489, 31
        %s492 = smul.addr %s491, 8
        %s493 = scalar_lea.vmem %s1, %s492
      $region36: #{tpu_custom_call.1} parent=31 // pred_fallthru
        _
    $region32: #{tpu_custom_call.1} parent=5 // pred_fallthru
      _
  $region6: #{tpu_custom_call.1} parent=0 // loop_footer
    %s11 = sadd.s32 1, %s7
  $region7: #{tpu_custom_call.1} parent=0 // loop_footer_branch
    %6 = sbr.rel target = $region3
  $region8: #{tpu_custom_call.1} parent=0 // loop_exit
    _

</llo_original>
